<compile_context>
chip_gen: v6e
topology: v6e:2x2x1
jax: 0.10.0
libtpu: 0.0.40
codegen_flags: <defaults>
</compile_context>

<pallas_src>
import jax
import jax.numpy as jnp
from jax.experimental import pallas as pl
from jax.experimental.pallas import tpu as pltpu

MARGIN = 2.0
EPS = 1e-6  # torch F.pairwise_distance default eps (added to the difference)

_MAX_TILE_ROWS = 2048     # hard ceiling on rows per tile
_MIN_TILE_ROWS_BW = 512   # >=512 rows already hits ~85% of HBM roofline
_TARGET_BLOCKS = 4        # aim for >=4 grid blocks (megacore + pipeline overlap)


def _round_up(x, m):
    return ((x + m - 1) // m) * m


def _vmem_budgets():
    """(stream_budget_bytes, vmem_limit_bytes), sized per TPU generation."""
    try:
        cap = pltpu.get_tpu_info().vmem_capacity_bytes
    except Exception:
        cap = 64 * 1024 * 1024  # conservative (v7x-sized) fallback
    if cap >= 100 * 1024 * 1024:
        # v5e / v6e: 128 MiB physical VMEM -> large tiles, big scoped limit.
        return 48 * 1024 * 1024, 96 * 1024 * 1024
    # v7x: 64 MiB physical VMEM -> leave headroom for outputs / temporaries.
    return 24 * 1024 * 1024, 48 * 1024 * 1024


def _choose_tile_b(batch, dim, dtype, stream_budget):
    itemsize = jnp.dtype(dtype).itemsize
    sublane = max(8, 32 // itemsize)       # 8 for f32, 16 for bf16, 32 for int8
    d_pad = _round_up(dim, 128)            # lane padding: (tb,32) costs same VMEM as (tb,128)
    # 3 inputs x 2 pipeline buffers (native dtype) + ~3 live f32 temporaries
    # per row (upcast + dp/dn elementwise chain).
    per_row = 3 * 2 * d_pad * itemsize + 3 * d_pad * 4
    tb = stream_budget // max(per_row, 1)
    tb = min(tb, _MAX_TILE_ROWS)
    # Megacore: cap tb so multi-TC chips get several blocks, but never drop
    # below the 512-row bandwidth floor because of the split.
    parallel_cap = max(_MIN_TILE_ROWS_BW,
                       _round_up(pl.cdiv(batch, _TARGET_BLOCKS), sublane))
    tb = min(tb, parallel_cap)
    tb = max(sublane, (tb // sublane) * sublane)   # sublane-aligned
    tb = min(tb, _round_up(batch, sublane))        # no bigger than padded batch
    return int(tb)


def _make_kernel(batch, tile_b, margin, eps):
    def kernel(a_ref, p_ref, n_ref, part_ref):
        i = pl.program_id(0)

        # Native-dtype tiles, upcast in-register (cheap VALU work under DMA).
        a = a_ref[...].astype(jnp.float32)
        p = p_ref[...].astype(jnp.float32)
        n = n_ref[...].astype(jnp.float32)

        dp = a - p + eps
        dn = a - n + eps
        # Single reduction: sum((dp - dn) * (dp + dn)) == d1^2 - d2^2.
        # (sqrt is never needed: the loss squares the distances and the
        #  accuracy comparison is monotone.)
        diff = jnp.sum((dp - dn) * (dp + dn), axis=1, keepdims=True)  # (TB, 1)

        # Mask rows past the true batch size (ragged last tile / OOB padding).
        rows = jax.lax.broadcasted_iota(jnp.int32, diff.shape, 0)
        valid = (i * tile_b + rows) < batch
        # Keep selects (not multiplies): OOB rows may hold garbage and must
        # not propagate NaN/Inf into the sums.
        loss_rows = jnp.where(valid, jnp.maximum(diff + margin, 0.0), 0.0)
        corr_rows = jnp.where(jnp.logical_and(valid, diff < 0.0), 1.0, 0.0)

        loss_sum = jnp.sum(loss_rows)
        corr_sum = jnp.sum(corr_rows)

        # Lane-dense partials row: lane 0 = loss sum, lane 1 = correct count.
        lane = jax.lax.broadcasted_iota(jnp.int32, part_ref.shape, 2)
        part_ref[...] = jnp.where(
            lane == 0, loss_sum, jnp.where(lane == 1, corr_sum, 0.0))

    return kernel


def triplet_loss(anchor, positive, negative, margin=MARGIN):
    """anchor, positive, negative: (B, D) arrays. Returns (loss, acc) scalars."""
    B, D = anchor.shape
    itemsize = jnp.dtype(anchor.dtype).itemsize
    stream_budget, vmem_limit = _vmem_budgets()
    tb = _choose_tile_b(B, D, anchor.dtype, stream_budget)
    nblocks = pl.cdiv(B, tb)

    kernel = _make_kernel(B, tb, float(margin), EPS)

    cost = pl.CostEstimate(
        flops=8 * B * D,
        transcendentals=0,
        bytes_accessed=3 * B * D * itemsize + nblocks * 128 * 4,
    )

    partials = pl.pallas_call(
        kernel,
        out_shape=jax.ShapeDtypeStruct((nblocks, 1, 128), jnp.float32),
        grid_spec=pltpu.PrefetchScalarGridSpec(
            num_scalar_prefetch=0,
            grid=(nblocks,),
            in_specs=[
                pl.BlockSpec((tb, D), lambda i: (i, 0)),
                pl.BlockSpec((tb, D), lambda i: (i, 0)),
                pl.BlockSpec((tb, D), lambda i: (i, 0)),
            ],
            out_specs=pl.BlockSpec((1, 1, 128), lambda i: (i, 0, 0)),
        ),
        compiler_params=pltpu.CompilerParams(
            dimension_semantics=("parallel",),
            vmem_limit_bytes=vmem_limit,
        ),
        cost_estimate=cost,
    )(anchor, positive, negative)

    inv_b = 1.0 / B
    loss = jnp.sum(partials[:, 0, 0]) * inv_b
    acc = jnp.sum(partials[:, 0, 1]) * inv_b
    return loss, acc


def _reference(anchor, positive, negative, margin=MARGIN):
    d1 = jnp.sqrt(jnp.sum((anchor - positive + EPS) ** 2, axis=1))
    d2 = jnp.sqrt(jnp.sum((anchor - negative + EPS) ** 2, axis=1))
    loss = jnp.mean(jnp.maximum(d1 ** 2 - d2 ** 2 + margin, 0.0))
    acc = jnp.sum((d1 < d2).astype(jnp.float32)) / d1.shape[0]
    return loss, acc


if __name__ == "__main__":
    key = jax.random.PRNGKey(0)
    k1, k2, k3 = jax.random.split(key, 3)
    B, D = 8, 32
    anchor = jax.random.normal(k1, (B, D), dtype=jnp.float32)
    positive = jax.random.normal(k2, (B, D), dtype=jnp.float32)
    negative = jax.random.normal(k3, (B, D), dtype=jnp.float32)

    loss, acc = jax.jit(triplet_loss)(anchor, positive, negative)
    jax.block_until_ready((loss, acc))

    ref_loss, ref_acc = _reference(anchor, positive, negative)
    assert jnp.allclose(loss, ref_loss, atol=1e-5, rtol=1e-5), (loss, ref_loss)
    assert jnp.allclose(acc, ref_acc, atol=1e-6), (acc, ref_acc)
    print("KERNEL_OK")
</pallas_src>

<mosaic_0001>
module attributes {stable_mosaic.version = 11 : i64} {
  func.func @kernel(%arg0: i32, %arg1: memref<8x32xf32, #tpu.memory_space<vmem>>, %arg2: memref<8x32xf32, #tpu.memory_space<vmem>>, %arg3: memref<8x32xf32, #tpu.memory_space<vmem>>, %arg4: memref<1x1x128xf32, #tpu.memory_space<vmem>>) attributes {dimension_semantics = [#tpu.dimension_semantics<parallel>], iteration_bounds = array<i64: 1>, scalar_prefetch = 0 : i64, scratch_operands = 0 : i64, tpu.core_type = #tpu.core_type<tc>, window_params = [{transform_indices = @transform_0, window_bounds = array<i64: 8, 32>}, {transform_indices = @transform_1, window_bounds = array<i64: 8, 32>}, {transform_indices = @transform_2, window_bounds = array<i64: 8, 32>}, {transform_indices = @transform_3, window_bounds = array<i64: 1, 1, 128>}]} {
    %c0 = arith.constant 0 : index
    %c0_0 = arith.constant 0 : index
    %0 = vector.load %arg1[%c0, %c0_0] : memref<8x32xf32, #tpu.memory_space<vmem>>, vector<8x32xf32>
    %c0_1 = arith.constant 0 : index
    %c0_2 = arith.constant 0 : index
    %1 = vector.load %arg2[%c0_1, %c0_2] : memref<8x32xf32, #tpu.memory_space<vmem>>, vector<8x32xf32>
    %c0_3 = arith.constant 0 : index
    %c0_4 = arith.constant 0 : index
    %2 = vector.load %arg3[%c0_3, %c0_4] : memref<8x32xf32, #tpu.memory_space<vmem>>, vector<8x32xf32>
    %3 = arith.subf %0, %1 : vector<8x32xf32>
    %cst = arith.constant 9.99999997E-7 : f32
    %4 = vector.broadcast %cst : f32 to vector<8x32xf32>
    %5 = arith.addf %3, %4 : vector<8x32xf32>
    %6 = arith.subf %0, %2 : vector<8x32xf32>
    %cst_5 = arith.constant 9.99999997E-7 : f32
    %7 = vector.broadcast %cst_5 : f32 to vector<8x32xf32>
    %8 = arith.addf %6, %7 : vector<8x32xf32>
    %9 = arith.subf %5, %8 : vector<8x32xf32>
    %10 = arith.addf %5, %8 : vector<8x32xf32>
    %11 = arith.mulf %9, %10 : vector<8x32xf32>
    %cst_6 = arith.constant dense<0.000000e+00> : vector<8xf32>
    %12 = vector.multi_reduction <add>, %11, %cst_6 [1] : vector<8x32xf32> to vector<8xf32>
    %13 = vector.shape_cast %12 : vector<8xf32> to vector<8x1xf32>
    %14 = tpu.iota {dimensions = array<i32: 0>} : vector<8x1xi32>
    %c8_i32 = arith.constant 8 : i32
    %15 = arith.muli %arg0, %c8_i32 : i32
    %16 = vector.broadcast %15 : i32 to vector<8x1xi32>
    %17 = arith.addi %16, %14 : vector<8x1xi32>
    %c8_i32_7 = arith.constant 8 : i32
    %18 = vector.broadcast %c8_i32_7 : i32 to vector<8x1xi32>
    %19 = arith.cmpi slt, %17, %18 : vector<8x1xi32>
    %cst_8 = arith.constant 2.000000e+00 : f32
    %20 = vector.broadcast %cst_8 : f32 to vector<8x1xf32>
    %21 = arith.addf %13, %20 : vector<8x1xf32>
    %cst_9 = arith.constant 0.000000e+00 : f32
    %22 = vector.broadcast %cst_9 : f32 to vector<8x1xf32>
    %23 = arith.maximumf %21, %22 : vector<8x1xf32>
    %cst_10 = arith.constant 0.000000e+00 : f32
    %24 = vector.broadcast %cst_10 : f32 to vector<8x1xf32>
    %25 = arith.select %19, %23, %24 : vector<8x1xi1>, vector<8x1xf32>
    %cst_11 = arith.constant 0.000000e+00 : f32
    %26 = vector.broadcast %cst_11 : f32 to vector<8x1xf32>
    %27 = arith.cmpf olt, %13, %26 : vector<8x1xf32>
    %28 = arith.andi %19, %27 : vector<8x1xi1>
    %cst_12 = arith.constant 1.000000e+00 : f32
    %cst_13 = arith.constant 0.000000e+00 : f32
    %29 = vector.broadcast %cst_12 : f32 to vector<8x1xf32>
    %30 = vector.broadcast %cst_13 : f32 to vector<8x1xf32>
    %31 = arith.select %28, %29, %30 : vector<8x1xi1>, vector<8x1xf32>
    %32 = vector.shape_cast %25 : vector<8x1xf32> to vector<1x8x1xf32>
    %cst_14 = arith.constant dense<0.000000e+00> : vector<1xf32>
    %33 = vector.multi_reduction <add>, %32, %cst_14 [1, 2] : vector<1x8x1xf32> to vector<1xf32>
    %34 = vector.shape_cast %33 : vector<1xf32> to vector<1x1x1xf32>
    %35 = vector.extract %34[0, 0, 0] : f32 from vector<1x1x1xf32>
    %36 = vector.shape_cast %31 : vector<8x1xf32> to vector<1x8x1xf32>
    %cst_15 = arith.constant dense<0.000000e+00> : vector<1xf32>
    %37 = vector.multi_reduction <add>, %36, %cst_15 [1, 2] : vector<1x8x1xf32> to vector<1xf32>
    %38 = vector.shape_cast %37 : vector<1xf32> to vector<1x1x1xf32>
    %39 = vector.extract %38[0, 0, 0] : f32 from vector<1x1x1xf32>
    %40 = tpu.iota {dimensions = array<i32: 2>} : vector<1x1x128xi32>
    %c0_i32 = arith.constant 0 : i32
    %41 = vector.broadcast %c0_i32 : i32 to vector<1x1x128xi32>
    %42 = arith.cmpi eq, %40, %41 : vector<1x1x128xi32>
    %c1_i32 = arith.constant 1 : i32
    %43 = vector.broadcast %c1_i32 : i32 to vector<1x1x128xi32>
    %44 = arith.cmpi eq, %40, %43 : vector<1x1x128xi32>
    %cst_16 = arith.constant 0.000000e+00 : f32
    %45 = vector.broadcast %39 : f32 to vector<1x1x128xf32>
    %46 = vector.broadcast %cst_16 : f32 to vector<1x1x128xf32>
    %47 = arith.select %44, %45, %46 : vector<1x1x128xi1>, vector<1x1x128xf32>
    %48 = vector.broadcast %35 : f32 to vector<1x1x128xf32>
    %49 = arith.select %42, %48, %47 : vector<1x1x128xi1>, vector<1x1x128xf32>
    %c0_17 = arith.constant 0 : index
    %c0_18 = arith.constant 0 : index
    %c0_19 = arith.constant 0 : index
    %50 = vector.load %arg4[%c0_17, %c0_18, %c0_19] : memref<1x1x128xf32, #tpu.memory_space<vmem>>, vector<1x1x128xf32>
    tpu.vector_store %arg4[%c0_17, %c0_18, %c0_19], %49 {strides = array<i32>} : memref<1x1x128xf32, #tpu.memory_space<vmem>>, vector<1x1x128xf32>,
    return
  }
  func.func @transform_0(%arg0: i32) -> (i32, i32) {
    %c0_i32 = arith.constant 0 : i32
    %c0_i32_0 = arith.constant 0 : i32
    return %arg0, %c0_i32 : i32, i32
  }
  func.func @transform_1(%arg0: i32) -> (i32, i32) {
    %c0_i32 = arith.constant 0 : i32
    %c0_i32_0 = arith.constant 0 : i32
    return %arg0, %c0_i32 : i32, i32
  }
  func.func @transform_2(%arg0: i32) -> (i32, i32) {
    %c0_i32 = arith.constant 0 : i32
    %c0_i32_0 = arith.constant 0 : i32
    return %arg0, %c0_i32 : i32, i32
  }
  func.func @transform_3(%arg0: i32) -> (i32, i32, i32) {
    %c0_i32 = arith.constant 0 : i32
    %c0_i32_0 = arith.constant 0 : i32
    %c0_i32_1 = arith.constant 0 : i32
    return %arg0, %c0_i32, %c0_i32_0 : i32, i32, i32
  }
}

</mosaic_0001>

<llo_original>
// kernel: triplet_loss.1
$region0: #{triplet_loss.1}
  #allocation0 [shape = 'u32[]', space=smem, size = 0x4, offset = 0x4, fixed_abs, tag = 'smem constant byte address 0x4 - core index']
  #allocation1 [shape = 'u32[144,128]{1,0:T(1,128)}', space=vmem, size = 0x12000, scoped, tag = 'internal scratch']
  %s0 = inlined_call_operand.hbm [shape: f32[8,32], index: 0, kind: input, shape index: {}]
  %s1 = inlined_call_operand.hbm [shape: f32[8,32], index: 1, kind: input, shape index: {}]
  %s2 = inlined_call_operand.hbm [shape: f32[8,32], index: 2, kind: input, shape index: {}]
  %s3 = inlined_call_operand.vmem [shape: f32[1,1,128], index: 3, kind: output, shape index: {}]
  %s4 = sld [smem:[#allocation0]]
  $region34: #{triplet_loss.1} parent=0
    _
  %s6 = ssub.s32 1, %s4
  %s7 = scalar_select 0, %s6, %s4
  $region1: #{triplet_loss.1} parent=0
    #allocation2 [shape = 'u8[4096]{0}', space=vmem, size = 0x1000, scoped, tag = 'input window, operand 0, single buffered']
    #allocation3 [shape = 's32[1]{0}', space=sflag, size = 0x4, scoped, tag = 'scoped memory for triplet_loss.1']
    #allocation4 [shape = 'u8[4096]{0}', space=vmem, size = 0x1000, scoped, tag = 'input window, operand 1, single buffered']
    #allocation5 [shape = 's32[1]{0}', space=sflag, size = 0x4, scoped, tag = 'scoped memory for triplet_loss.1']
    #allocation6 [shape = 'u8[4096]{0}', space=vmem, size = 0x1000, scoped, tag = 'input window, operand 2, single buffered']
    %8 = vsyncpa [#allocation3], 0
    %9 = vsyncpa [#allocation5], 0
    // Predicated region
    $region2: #{triplet_loss.1} parent=1 // pred_check
      _
    $region3: #{triplet_loss.1} parent=1 // pred_check_branch
      %11 = sbr.rel (0) target = $region5
    $region4: #{triplet_loss.1} parent=1 // pred_region
      %s13 = ssub.s32 128, 128
      %14 = vsyncadd [#allocation3], %s13
      %s16 = sshll.u32 [#allocation2], 4
      %s17 = int_to_ptr.vmem [resolvable:$true] %s16
      %19 = dma.hbm_to_vmem [thread:$0]  %s0, 128, %s17, [#allocation3]
    $region5: #{triplet_loss.1} parent=1 // pred_fallthru
      _
    // Predicated region
    $region6: #{triplet_loss.1} parent=1 // pred_check
      _
    $region7: #{triplet_loss.1} parent=1 // pred_check_branch
      %21 = sbr.rel (0) target = $region9
    $region8: #{triplet_loss.1} parent=1 // pred_region
      %s23 = ssub.s32 128, 128
      %24 = vsyncadd [#allocation5], %s23
      %s26 = sshll.u32 [#allocation4], 4
      %s27 = int_to_ptr.vmem [resolvable:$true] %s26
      %29 = dma.hbm_to_vmem [thread:$0]  %s1, 128, %s27, [#allocation5]
    $region9: #{triplet_loss.1} parent=1 // pred_fallthru
      _
    // Predicated region
    $region10: #{triplet_loss.1} parent=1 // pred_check
      _
    $region11: #{triplet_loss.1} parent=1 // pred_check_branch
      %31 = sbr.rel (0) target = $region13
    $region12: #{triplet_loss.1} parent=1 // pred_region
      %s33 = ssub.s32 128, 128
      %34 = vsyncadd [#allocation5], %s33
      %s36 = sshll.u32 [#allocation6], 4
      %s37 = int_to_ptr.vmem [resolvable:$true] %s36
      %39 = dma.hbm_to_vmem [thread:$0]  %s2, 128, %s37, [#allocation5]
    $region13: #{triplet_loss.1} parent=1 // pred_fallthru
      _
    // Predicated region
    $region14: #{triplet_loss.1} parent=1 // pred_check
      _
    $region15: #{triplet_loss.1} parent=1 // pred_check_branch
      %41 = sbr.rel (0) target = $region17
    $region16: #{triplet_loss.1} parent=1 // pred_region
      %42 = dma.done [#allocation3], 128
    $region17: #{triplet_loss.1} parent=1 // pred_fallthru
      _
    // Predicated region
    $region18: #{triplet_loss.1} parent=1 // pred_check
      _
    $region19: #{triplet_loss.1} parent=1 // pred_check_branch
      %44 = sbr.rel (0) target = $region21
    $region20: #{triplet_loss.1} parent=1 // pred_region
      %45 = dma.done [#allocation5], 128
    $region21: #{triplet_loss.1} parent=1 // pred_fallthru
      _
    // Predicated region
    $region22: #{triplet_loss.1} parent=1 // pred_check
      _
    $region23: #{triplet_loss.1} parent=1 // pred_check_branch
      %47 = sbr.rel (0) target = $region25
    $region24: #{triplet_loss.1} parent=1 // pred_region
      %48 = dma.done [#allocation5], 128
    $region25: #{triplet_loss.1} parent=1 // pred_fallthru
      _
    %v49 = vld [vmem:[#allocation2] sm:$0xff]
    %v50 = vld [vmem:[#allocation4] sm:$0xff]
    %v51 = vld [vmem:[#allocation6] sm:$0xff]
    %v52 = vsub.f32 %v49, %v50
    %v53 = vadd.f32 %v52, 1e-06
    %v54 = vsub.f32 %v49, %v51
    %v55 = vadd.f32 %v54, 1e-06
    %v56 = vsub.f32 %v53, %v55
    %v57 = vadd.f32 %v53, %v55
    %v58 = vmul.f32 %v56, %v57
    %vm59 = vcmask 261120
    %v60 = vsel %vm59, %v58, 0.0
    %61 = vadd.xlane.f32.xlu0 %v60
    %v62 = vpop.xlane.xlu0 %61
    %v63 = vlaneseq
    %v64 = vshrl.u32 %v63, 7
    %s65 = smul.u32 0, 8
    %v66 = vstv %s65
    %v67 = vadd.s32 %v66, %v64
    %vm68 = vcmp.lt.s32.totalorder %v67, 8
    %v69 = vadd.f32 %v62, 2.0
    %v70 = vmax.f32 %v69, 0.0
    %v71 = vsel %vm68, %v70, 0.0
    %vm72 = vcmp.lt.f32.partialorder %v62, 0.0
    %vm73 = vmand %vm68, %vm72
    %v74 = vsel %vm73, 1.0, 0.0
    %vm75 = vcmask 7168
    %v76 = vsel %vm75, %v71, 0.0
    %77 = vadd.xlane.f32.xlu0 %v76
    %v78 = vpop.xlane.xlu0 %77
    %v79 = vrot.slane %v78, 4
    %v80 = vadd.f32 %v78, %v79
    %v81 = vrot.slane %v80, 2
    %v82 = vadd.f32 %v80, %v81
    %v83 = vrot.slane %v82, 1
    %v84 = vadd.f32 %v82, %v83
    %s85 = vtos %v84
    %v86 = vsel %vm75, %v74, 0.0
    %87 = vadd.xlane.f32.xlu0 %v86
    %v88 = vpop.xlane.xlu0 %87
    %v89 = vrot.slane %v88, 4
    %v90 = vadd.f32 %v88, %v89
    %v91 = vrot.slane %v90, 2
    %v92 = vadd.f32 %v90, %v91
    %v93 = vrot.slane %v92, 1
    %v94 = vadd.f32 %v92, %v93
    %s95 = vtos %v94
    %v96 = vlaneseq
    %v97 = vand.u32 %v96, 127
    %vm98 = vcmp.eq.s32.totalorder %v97, 0
    %vm99 = vcmp.eq.s32.totalorder %v97, 1
    %v100 = vstv %s95
    %v101 = vsel %vm99, %v100, 0.0
    %v102 = vstv %s85
    %v103 = vsel %vm98, %v102, %v101
    %104 = vst [vmem:[%s3] sm:$0x1] %v103
    // Predicated region
    $region26: #{triplet_loss.1} parent=1 // pred_check
      _
    $region27: #{triplet_loss.1} parent=1 // pred_check_branch
      %106 = sbr.rel (0) target = $region29
    $region28: #{triplet_loss.1} parent=1 // pred_region
      _
    $region29: #{triplet_loss.1} parent=1 // pred_fallthru
      _
    // Predicated region
    $region30: #{triplet_loss.1} parent=1 // pred_check
      _
    $region31: #{triplet_loss.1} parent=1 // pred_check_branch
      %108 = sbr.rel (0) target = $region33
    $region32: #{triplet_loss.1} parent=1 // pred_region
      _
    $region33: #{triplet_loss.1} parent=1 // pred_fallthru
      _
    %109 = vsyncpa [#allocation3], 1
    %110 = vsyncpa [#allocation5], 1

</llo_original>
